<compile_context>
chip_gen: v5e
topology: v5e:2x2
jax: 0.10.0
libtpu: 0.0.40
codegen_flags: <defaults>
</compile_context>

<pallas_src>
import functools

import jax
import jax.numpy as jnp
from jax.experimental import pallas as pl
from jax.experimental.pallas import tpu as pltpu


def _round_up(x, m):
    return (x + m - 1) // m * m


def _pick_tile(n, candidates):
    for c in candidates:
        if n % c == 0:
            return c
    return n


# ---------------------------------------------------------------------------
# Stage 1: per-head QKV projection (runs once per (batch, head, seq-tile)).
# ---------------------------------------------------------------------------
def _qkv_proj_kernel(x_ref, wq_ref, wk_ref, wv_ref, bqkv_ref, q_ref, k_ref, v_ref):
    x = x_ref[0]                           # (ts, E) compute dtype
    b = bqkv_ref[0]                        # (3, hd_pad) f32 (bq already scaled)
    q = jnp.dot(x, wq_ref[0], preferred_element_type=jnp.float32) + b[0:1, :]
    k = jnp.dot(x, wk_ref[0], preferred_element_type=jnp.float32) + b[1:2, :]
    v = jnp.dot(x, wv_ref[0], preferred_element_type=jnp.float32) + b[2:3, :]
    q_ref[0, 0] = q.astype(q_ref.dtype)
    k_ref[0, 0] = k.astype(k_ref.dtype)
    v_ref[0, 0] = v.astype(v_ref.dtype)


# ---------------------------------------------------------------------------
# Stage 2: flash attention with fused (per-head accumulated) output projection.
# grid = (B, n_qt, H, n_kv); output block resident across (H, n_kv).
# ---------------------------------------------------------------------------
def _flash_attn_kernel(q_ref, k_ref, v_ref, wo_ref, bo_ref, o_ref,
                       m_ref, l_ref, ctx_ref, acc_ref, *, exact_recip):
    h = pl.program_id(2)
    kv = pl.program_id(3)
    last_h = pl.num_programs(2) - 1
    last_kv = pl.num_programs(3) - 1

    # Initialise the fused out-projection accumulator with the output bias.
    @pl.when((h == 0) & (kv == 0))
    def _init_out():
        acc_ref[...] = jnp.broadcast_to(bo_ref[...], acc_ref.shape).astype(jnp.float32)

    # Reset online-softmax state at the start of each head's KV sweep.
    @pl.when(kv == 0)
    def _init_head():
        m_ref[...] = jnp.full(m_ref.shape, -jnp.inf, jnp.float32)
        l_ref[...] = jnp.zeros(l_ref.shape, jnp.float32)
        ctx_ref[...] = jnp.zeros(ctx_ref.shape, jnp.float32)

    q = q_ref[0, 0]                        # (tq, hd_pad), scale folded into Wq/bq
    k = k_ref[0, 0]                        # (tk, hd_pad)
    v = v_ref[0, 0]                        # (tk, hd_pad)

    # scores = q @ k^T (contract head_dim directly; padded lanes are zero).
    s = jax.lax.dot_general(q, k, (((1,), (1,)), ((), ())),
                            preferred_element_type=jnp.float32)     # (tq, tk)
    # TODO(synk): attention mask and training-mode attention dropout not implemented.

    # Online (flash) softmax update, all f32 on the VPU.
    m_prev = m_ref[...]
    m_new = jnp.maximum(m_prev, jnp.max(s, axis=-1, keepdims=True))
    alpha = jnp.exp(m_prev - m_new)
    p = jnp.exp(s - m_new)
    l_ref[...] = alpha * l_ref[...] + jnp.sum(p, axis=-1, keepdims=True)
    ctx_ref[...] = alpha * ctx_ref[...] + jnp.dot(
        p.astype(v.dtype), v, preferred_element_type=jnp.float32)
    m_ref[...] = m_new

    # At the last KV tile: normalise the (tq, hd_pad) context (denominator on
    # the small axis, EUP reciprocal) and accumulate this head's out-projection.
    @pl.when(kv == last_kv)
    def _finish_head():
        inv_l = pl.reciprocal(l_ref[...], approx=not exact_recip)
        head_out = (ctx_ref[...] * inv_l).astype(wo_ref.dtype)      # (tq, hd_pad)
        acc_ref[...] += jnp.dot(head_out, wo_ref[0],
                                preferred_element_type=jnp.float32)

    @pl.when((kv == last_kv) & (h == last_h))
    def _write():
        o_ref[0] = acc_ref[...].astype(o_ref.dtype)


def multi_head_self_attention(x, w_qkv, b_qkv, w_out, b_out, *, num_heads,
                              compute_dtype=jnp.bfloat16):
    """x: (B, S, E).  w_qkv: (3E, E), b_qkv: (3E,), w_out: (E, E), b_out: (E,)
    (PyTorch nn.Linear parameter shapes).  Returns (B, S, E) in x.dtype."""
    x = jnp.asarray(x)
    B, S, E = x.shape
    assert E % num_heads == 0, "Embedding dimension must be divisible by number of heads"
    hd = E // num_heads
    hd_pad = _round_up(hd, 128)
    e_pad = _round_up(E, 128)
    scale = 1.0 / float(hd) ** 0.5

    # Tile sizes: biggest standard tile that divides S, else whole-sequence.
    ts = _pick_tile(S, (256, 128))        # stage-1 sequence tile
    tq = _pick_tile(S, (256, 128))        # stage-2 query tile
    tk = _pick_tile(S, (512, 256, 128))   # stage-2 key/value tile
    n_st, n_qt, n_kv = S // ts, S // tq, S // tk

    # ---- Host-side weight re-layout (lane-aligned per-head tiles) ----
    w = jnp.asarray(w_qkv, jnp.float32).T.reshape(E, 3, num_heads, hd)
    w = jnp.transpose(w, (1, 2, 0, 3))                       # (3, H, E, hd)
    w = jnp.pad(w, ((0, 0), (0, 0), (0, 0), (0, hd_pad - hd)))
    wq = (w[0] * scale).astype(compute_dtype)                 # scale folded into Wq
    wk = w[1].astype(compute_dtype)
    wv = w[2].astype(compute_dtype)

    b = jnp.asarray(b_qkv, jnp.float32).reshape(3, num_heads, hd)
    b = jnp.pad(b, ((0, 0), (0, 0), (0, hd_pad - hd)))
    b = b.at[0].multiply(scale)                               # scale folded into bq
    b_h = jnp.transpose(b, (1, 0, 2))                         # (H, 3, hd_pad) f32

    w_out_h = jnp.asarray(w_out, jnp.float32).T.reshape(num_heads, hd, E)
    w_out_h = jnp.pad(w_out_h, ((0, 0), (0, hd_pad - hd), (0, e_pad - E)))
    w_out_h = w_out_h.astype(compute_dtype)                   # (H, hd_pad, e_pad)
    b_out_p = jnp.pad(jnp.asarray(b_out, jnp.float32), (0, e_pad - E)).reshape(1, e_pad)

    x_c = x.astype(compute_dtype)                             # bf16 DMA + bf16 VMEM residency
    it = jnp.dtype(compute_dtype).itemsize

    # ---- Stage 1: per-head Q/K/V projection ----
    qkv_cost = pl.CostEstimate(
        flops=2 * B * S * E * 3 * num_heads * hd_pad,
        transcendentals=0,
        bytes_accessed=(B * S * E * it
                        + B * n_st * 3 * E * hd_pad * it
                        + 3 * B * num_heads * S * hd_pad * it))

    q_h, k_h, v_h = pl.pallas_call(
        _qkv_proj_kernel,
        out_shape=(
            jax.ShapeDtypeStruct((B, num_heads, S, hd_pad), compute_dtype),
            jax.ShapeDtypeStruct((B, num_heads, S, hd_pad), compute_dtype),
            jax.ShapeDtypeStruct((B, num_heads, S, hd_pad), compute_dtype),
        ),
        grid_spec=pltpu.PrefetchScalarGridSpec(
            num_scalar_prefetch=0,
            grid=(B, n_st, num_heads),
            in_specs=[
                pl.BlockSpec((1, ts, E), lambda b, st, h: (b, st, 0)),       # x (resident across h)
                pl.BlockSpec((1, E, hd_pad), lambda b, st, h: (h, 0, 0)),    # Wq (per head)
                pl.BlockSpec((1, E, hd_pad), lambda b, st, h: (h, 0, 0)),    # Wk
                pl.BlockSpec((1, E, hd_pad), lambda b, st, h: (h, 0, 0)),    # Wv
                pl.BlockSpec((1, 3, hd_pad), lambda b, st, h: (h, 0, 0)),    # qkv biases
            ],
            out_specs=(
                pl.BlockSpec((1, 1, ts, hd_pad), lambda b, st, h: (b, h, st, 0)),
                pl.BlockSpec((1, 1, ts, hd_pad), lambda b, st, h: (b, h, st, 0)),
                pl.BlockSpec((1, 1, ts, hd_pad), lambda b, st, h: (b, h, st, 0)),
            ),
        ),
        compiler_params=pltpu.CompilerParams(
            dimension_semantics=("parallel", "parallel", "arbitrary")),
        cost_estimate=qkv_cost,
    )(x_c, wq, wk, wv, b_h)

    # ---- Stage 2: flash attention + fused output projection ----
    exact_recip = jnp.dtype(compute_dtype) == jnp.dtype(jnp.float32)
    attn_kernel = functools.partial(_flash_attn_kernel, exact_recip=exact_recip)

    attn_cost = pl.CostEstimate(
        flops=(4 * B * num_heads * S * S * hd_pad
               + 2 * B * S * num_heads * hd_pad * e_pad),
        transcendentals=B * num_heads * S * S,
        bytes_accessed=(B * num_heads * S * hd_pad * it * (1 + 2 * n_qt)
                        + B * n_qt * num_heads * hd_pad * e_pad * it
                        + B * S * e_pad * x.dtype.itemsize))

    out_padded = pl.pallas_call(
        attn_kernel,
        out_shape=jax.ShapeDtypeStruct((B, S, e_pad), x.dtype),
        grid_spec=pltpu.PrefetchScalarGridSpec(
            num_scalar_prefetch=0,
            grid=(B, n_qt, num_heads, n_kv),
            in_specs=[
                pl.BlockSpec((1, 1, tq, hd_pad), lambda b, qt, h, kv: (b, h, qt, 0)),  # Q
                pl.BlockSpec((1, 1, tk, hd_pad), lambda b, qt, h, kv: (b, h, kv, 0)),  # K
                pl.BlockSpec((1, 1, tk, hd_pad), lambda b, qt, h, kv: (b, h, kv, 0)),  # V
                pl.BlockSpec((1, hd_pad, e_pad), lambda b, qt, h, kv: (h, 0, 0)),      # Wout (per head)
                pl.BlockSpec((1, e_pad), lambda b, qt, h, kv: (0, 0)),                 # out bias
            ],
            out_specs=pl.BlockSpec((1, tq, e_pad), lambda b, qt, h, kv: (b, qt, 0)),
            scratch_shapes=[
                pltpu.VMEM((tq, 1), jnp.float32),        # running max  m
                pltpu.VMEM((tq, 1), jnp.float32),        # running sum  l
                pltpu.VMEM((tq, hd_pad), jnp.float32),   # per-head context accumulator
                pltpu.VMEM((tq, e_pad), jnp.float32),    # fused out-projection accumulator
            ],
        ),
        compiler_params=pltpu.CompilerParams(
            dimension_semantics=("parallel", "parallel", "arbitrary", "arbitrary")),
        cost_estimate=attn_cost,
    )(q_h, k_h, v_h, w_out_h, b_out_p)

    return out_padded[:, :, :E]


def _reference(x, w_qkv, b_qkv, w_out, b_out, num_heads):
    """Pure-JAX f32 reference mirroring the PyTorch forward (eval mode, mask=None)."""
    B, S, E = x.shape
    hd = E // num_heads
    qkv = x @ w_qkv.T + b_qkv                                        # (B, S, 3E)
    q, k, v = jnp.split(qkv, 3, axis=-1)

    def heads(t):
        return t.reshape(B, S, num_heads, hd).transpose(0, 2, 1, 3)  # (B, H, S, hd)

    q, k, v = heads(q), heads(k), heads(v)
    scores = jnp.einsum("bhqd,bhkd->bhqk", q, k) / (hd ** 0.5)
    w = jax.nn.softmax(scores, axis=-1)
    o = jnp.einsum("bhqk,bhkd->bhqd", w, v)
    o = o.transpose(0, 2, 1, 3).reshape(B, S, E)
    return o @ w_out.T + b_out


if __name__ == "__main__":
    B, S, E, H = 2, 8, 32, 4

    key = jax.random.PRNGKey(0)
    kx, k1, k2, k3, k4 = jax.random.split(key, 5)

    x = jax.random.normal(kx, (B, S, E), dtype=jnp.float32)

    # Deterministic parameter init with nn.Linear shapes (scaled like torch default).
    lim = 1.0 / (E ** 0.5)
    w_qkv = jax.random.uniform(k1, (3 * E, E), minval=-lim, maxval=lim, dtype=jnp.float32)
    b_qkv = jax.random.uniform(k2, (3 * E,), minval=-lim, maxval=lim, dtype=jnp.float32)
    w_out = jax.random.uniform(k3, (E, E), minval=-lim, maxval=lim, dtype=jnp.float32)
    b_out = jax.random.uniform(k4, (E,), minval=-lim, maxval=lim, dtype=jnp.float32)

    ref = _reference(x, w_qkv, b_qkv, w_out, b_out, H)

    # Fast path: bf16 MXU inputs / DMA, f32 accumulation (default).
    out_bf16 = multi_head_self_attention(x, w_qkv, b_qkv, w_out, b_out, num_heads=H)
    out_bf16 = jax.block_until_ready(out_bf16)
    assert out_bf16.shape == (B, S, E)
    assert jnp.allclose(out_bf16, ref, atol=3e-2, rtol=3e-2), \
        "Pallas kernel (bf16 compute) mismatch vs reference"

    # Full-precision path: same kernel structure, f32 MXU inputs, exact reciprocal.
    out_f32 = multi_head_self_attention(x, w_qkv, b_qkv, w_out, b_out, num_heads=H,
                                        compute_dtype=jnp.float32)
    out_f32 = jax.block_until_ready(out_f32)
    assert jnp.allclose(out_f32, ref, atol=5e-3, rtol=5e-3), \
        "Pallas kernel (f32 compute) mismatch vs reference"

    print("KERNEL_OK")
</pallas_src>

<mosaic_0001>
module attributes {stable_mosaic.version = 11 : i64} {
  func.func @_qkv_proj_kernel(%arg0: i32, %arg1: i32, %arg2: i32, %arg3: memref<1x8x32xbf16, #tpu.memory_space<vmem>>, %arg4: memref<1x32x128xbf16, #tpu.memory_space<vmem>>, %arg5: memref<1x32x128xbf16, #tpu.memory_space<vmem>>, %arg6: memref<1x32x128xbf16, #tpu.memory_space<vmem>>, %arg7: memref<1x3x128xf32, #tpu.memory_space<vmem>>, %arg8: memref<1x1x8x128xbf16, #tpu.memory_space<vmem>>, %arg9: memref<1x1x8x128xbf16, #tpu.memory_space<vmem>>, %arg10: memref<1x1x8x128xbf16, #tpu.memory_space<vmem>>) attributes {dimension_semantics = [#tpu.dimension_semantics<parallel>, #tpu.dimension_semantics<parallel>, #tpu.dimension_semantics<arbitrary>], iteration_bounds = array<i64: 2, 1, 4>, scalar_prefetch = 0 : i64, scratch_operands = 0 : i64, tpu.core_type = #tpu.core_type<tc>, window_params = [{transform_indices = @transform_0, window_bounds = array<i64: 1, 8, 32>}, {transform_indices = @transform_1, window_bounds = array<i64: 1, 32, 128>}, {transform_indices = @transform_2, window_bounds = array<i64: 1, 32, 128>}, {transform_indices = @transform_3, window_bounds = array<i64: 1, 32, 128>}, {transform_indices = @transform_4, window_bounds = array<i64: 1, 3, 128>}, {transform_indices = @transform_5, window_bounds = array<i64: 1, 1, 8, 128>}, {transform_indices = @transform_6, window_bounds = array<i64: 1, 1, 8, 128>}, {transform_indices = @transform_7, window_bounds = array<i64: 1, 1, 8, 128>}]} {
    %c0 = arith.constant 0 : index
    %c0_0 = arith.constant 0 : index
    %c0_1 = arith.constant 0 : index
    %0 = vector.load %arg3[%c0, %c0_0, %c0_1] : memref<1x8x32xbf16, #tpu.memory_space<vmem>>, vector<1x8x32xbf16>
    %1 = vector.shape_cast %0 : vector<1x8x32xbf16> to vector<8x32xbf16>
    %c0_2 = arith.constant 0 : index
    %c0_3 = arith.constant 0 : index
    %c0_4 = arith.constant 0 : index
    %2 = vector.load %arg7[%c0_2, %c0_3, %c0_4] : memref<1x3x128xf32, #tpu.memory_space<vmem>>, vector<1x3x128xf32>
    %3 = vector.shape_cast %2 : vector<1x3x128xf32> to vector<3x128xf32>
    %c0_5 = arith.constant 0 : index
    %c0_6 = arith.constant 0 : index
    %c0_7 = arith.constant 0 : index
    %4 = vector.load %arg4[%c0_5, %c0_6, %c0_7] : memref<1x32x128xbf16, #tpu.memory_space<vmem>>, vector<1x32x128xbf16>
    %5 = vector.shape_cast %4 : vector<1x32x128xbf16> to vector<32x128xbf16>
    %cst = arith.constant dense<0.000000e+00> : vector<8x128xf32>
    %6 = tpu.matmul %1, %5, %cst {dimension_numbers = #tpu.dot_dimension_numbers<[1], [0], [0], [1], [0, 0, 1, 1], [], []>} : vector<8x32xbf16>, vector<32x128xbf16>, vector<8x128xf32> -> vector<8x128xf32>
    %7 = vector.extract_strided_slice %3 {offsets = [0, 0], sizes = [1, 128], strides = [1, 1]} : vector<3x128xf32> to vector<1x128xf32>
    %8 = vector.broadcast %7 : vector<1x128xf32> to vector<8x128xf32>
    %9 = arith.addf %6, %8 : vector<8x128xf32>
    %c0_8 = arith.constant 0 : index
    %c0_9 = arith.constant 0 : index
    %c0_10 = arith.constant 0 : index
    %10 = vector.load %arg5[%c0_8, %c0_9, %c0_10] : memref<1x32x128xbf16, #tpu.memory_space<vmem>>, vector<1x32x128xbf16>
    %11 = vector.shape_cast %10 : vector<1x32x128xbf16> to vector<32x128xbf16>
    %cst_11 = arith.constant dense<0.000000e+00> : vector<8x128xf32>
    %12 = tpu.matmul %1, %11, %cst_11 {dimension_numbers = #tpu.dot_dimension_numbers<[1], [0], [0], [1], [0, 0, 1, 1], [], []>} : vector<8x32xbf16>, vector<32x128xbf16>, vector<8x128xf32> -> vector<8x128xf32>
    %13 = vector.extract_strided_slice %3 {offsets = [1, 0], sizes = [1, 128], strides = [1, 1]} : vector<3x128xf32> to vector<1x128xf32>
    %14 = vector.broadcast %13 : vector<1x128xf32> to vector<8x128xf32>
    %15 = arith.addf %12, %14 : vector<8x128xf32>
    %c0_12 = arith.constant 0 : index
    %c0_13 = arith.constant 0 : index
    %c0_14 = arith.constant 0 : index
    %16 = vector.load %arg6[%c0_12, %c0_13, %c0_14] : memref<1x32x128xbf16, #tpu.memory_space<vmem>>, vector<1x32x128xbf16>
    %17 = vector.shape_cast %16 : vector<1x32x128xbf16> to vector<32x128xbf16>
    %cst_15 = arith.constant dense<0.000000e+00> : vector<8x128xf32>
    %18 = tpu.matmul %1, %17, %cst_15 {dimension_numbers = #tpu.dot_dimension_numbers<[1], [0], [0], [1], [0, 0, 1, 1], [], []>} : vector<8x32xbf16>, vector<32x128xbf16>, vector<8x128xf32> -> vector<8x128xf32>
    %19 = vector.extract_strided_slice %3 {offsets = [2, 0], sizes = [1, 128], strides = [1, 1]} : vector<3x128xf32> to vector<1x128xf32>
    %20 = vector.broadcast %19 : vector<1x128xf32> to vector<8x128xf32>
    %21 = arith.addf %18, %20 : vector<8x128xf32>
    %22 = arith.truncf %9 : vector<8x128xf32> to vector<8x128xbf16>
    %c0_16 = arith.constant 0 : index
    %c0_17 = arith.constant 0 : index
    %c0_18 = arith.constant 0 : index
    %c0_19 = arith.constant 0 : index
    %23 = vector.load %arg8[%c0_16, %c0_17, %c0_18, %c0_19] : memref<1x1x8x128xbf16, #tpu.memory_space<vmem>>, vector<1x1x8x128xbf16>
    %24 = vector.shape_cast %23 : vector<1x1x8x128xbf16> to vector<8x128xbf16>
    %25 = vector.shape_cast %22 : vector<8x128xbf16> to vector<1x1x8x128xbf16>
    tpu.vector_store %arg8[%c0_16, %c0_17, %c0_18, %c0_19], %25 {strides = array<i32>} : memref<1x1x8x128xbf16, #tpu.memory_space<vmem>>, vector<1x1x8x128xbf16>,
    %26 = arith.truncf %15 : vector<8x128xf32> to vector<8x128xbf16>
    %c0_20 = arith.constant 0 : index
    %c0_21 = arith.constant 0 : index
    %c0_22 = arith.constant 0 : index
    %c0_23 = arith.constant 0 : index
    %27 = vector.load %arg9[%c0_20, %c0_21, %c0_22, %c0_23] : memref<1x1x8x128xbf16, #tpu.memory_space<vmem>>, vector<1x1x8x128xbf16>
    %28 = vector.shape_cast %27 : vector<1x1x8x128xbf16> to vector<8x128xbf16>
    %29 = vector.shape_cast %26 : vector<8x128xbf16> to vector<1x1x8x128xbf16>
    tpu.vector_store %arg9[%c0_20, %c0_21, %c0_22, %c0_23], %29 {strides = array<i32>} : memref<1x1x8x128xbf16, #tpu.memory_space<vmem>>, vector<1x1x8x128xbf16>,
    %30 = arith.truncf %21 : vector<8x128xf32> to vector<8x128xbf16>
    %c0_24 = arith.constant 0 : index
    %c0_25 = arith.constant 0 : index
    %c0_26 = arith.constant 0 : index
    %c0_27 = arith.constant 0 : index
    %31 = vector.load %arg10[%c0_24, %c0_25, %c0_26, %c0_27] : memref<1x1x8x128xbf16, #tpu.memory_space<vmem>>, vector<1x1x8x128xbf16>
    %32 = vector.shape_cast %31 : vector<1x1x8x128xbf16> to vector<8x128xbf16>
    %33 = vector.shape_cast %30 : vector<8x128xbf16> to vector<1x1x8x128xbf16>
    tpu.vector_store %arg10[%c0_24, %c0_25, %c0_26, %c0_27], %33 {strides = array<i32>} : memref<1x1x8x128xbf16, #tpu.memory_space<vmem>>, vector<1x1x8x128xbf16>,
    return
  }
  func.func @transform_0(%arg0: i32, %arg1: i32, %arg2: i32) -> (i32, i32, i32) {
    %c0_i32 = arith.constant 0 : i32
    %c0_i32_0 = arith.constant 0 : i32
    return %arg0, %arg1, %c0_i32 : i32, i32, i32
  }
  func.func @transform_1(%arg0: i32, %arg1: i32, %arg2: i32) -> (i32, i32, i32) {
    %c0_i32 = arith.constant 0 : i32
    %c0_i32_0 = arith.constant 0 : i32
    %c0_i32_1 = arith.constant 0 : i32
    return %arg2, %c0_i32, %c0_i32_0 : i32, i32, i32
  }
  func.func @transform_2(%arg0: i32, %arg1: i32, %arg2: i32) -> (i32, i32, i32) {
    %c0_i32 = arith.constant 0 : i32
    %c0_i32_0 = arith.constant 0 : i32
    %c0_i32_1 = arith.constant 0 : i32
    return %arg2, %c0_i32, %c0_i32_0 : i32, i32, i32
  }
  func.func @transform_3(%arg0: i32, %arg1: i32, %arg2: i32) -> (i32, i32, i32) {
    %c0_i32 = arith.constant 0 : i32
    %c0_i32_0 = arith.constant 0 : i32
    %c0_i32_1 = arith.constant 0 : i32
    return %arg2, %c0_i32, %c0_i32_0 : i32, i32, i32
  }
  func.func @transform_4(%arg0: i32, %arg1: i32, %arg2: i32) -> (i32, i32, i32) {
    %c0_i32 = arith.constant 0 : i32
    %c0_i32_0 = arith.constant 0 : i32
    %c0_i32_1 = arith.constant 0 : i32
    return %arg2, %c0_i32, %c0_i32_0 : i32, i32, i32
  }
  func.func @transform_5(%arg0: i32, %arg1: i32, %arg2: i32) -> (i32, i32, i32, i32) {
    %c0_i32 = arith.constant 0 : i32
    %c0_i32_0 = arith.constant 0 : i32
    return %arg0, %arg2, %arg1, %c0_i32 : i32, i32, i32, i32
  }
  func.func @transform_6(%arg0: i32, %arg1: i32, %arg2: i32) -> (i32, i32, i32, i32) {
    %c0_i32 = arith.constant 0 : i32
    %c0_i32_0 = arith.constant 0 : i32
    return %arg0, %arg2, %arg1, %c0_i32 : i32, i32, i32, i32
  }
  func.func @transform_7(%arg0: i32, %arg1: i32, %arg2: i32) -> (i32, i32, i32, i32) {
    %c0_i32 = arith.constant 0 : i32
    %c0_i32_0 = arith.constant 0 : i32
    return %arg0, %arg2, %arg1, %c0_i32 : i32, i32, i32, i32
  }
}

</mosaic_0001>

<llo_original>
// kernel: tpu_custom_call.1
$region0: #{tpu_custom_call.1}
  #allocation0 [shape = 'u32[]', space=smem, size = 0x4, offset = 0x4, fixed_abs, tag = 'smem constant byte address 0x4 - core index']
  #allocation1 [shape = 'u32[72,128]{1,0:T(1,128)}', space=vmem, size = 0x9000, scoped, tag = 'internal scratch']
  %s0 = inlined_call_operand.vmem [shape: bf16[2,8,32], index: 0, kind: input, shape index: {}]
  %s1 = inlined_call_operand.hbm [shape: bf16[4,32,128], index: 1, kind: input, shape index: {}]
  %s2 = inlined_call_operand.hbm [shape: bf16[4,32,128], index: 2, kind: input, shape index: {}]
  %s3 = inlined_call_operand.hbm [shape: bf16[4,32,128], index: 3, kind: input, shape index: {}]
  %s4 = inlined_call_operand.vmem [shape: f32[4,3,128], index: 4, kind: input, shape index: {}]
  %s5 = inlined_call_operand.hbm [shape: bf16[2,4,8,128], index: 5, kind: output, shape index: {0}]
  %s6 = inlined_call_operand.hbm [shape: bf16[2,4,8,128], index: 6, kind: output, shape index: {1}]
  %s7 = inlined_call_operand.hbm [shape: bf16[2,4,8,128], index: 7, kind: output, shape index: {2}]
  %8 = xla_tuple %s5, %s6, %s7
  %s9 = sld [smem:[#allocation0]]
  $region81: #{tpu_custom_call.1} parent=0
    _
  %s11 = ssub.s32 1, %s9
  %s12 = scalar_select 0, %s11, %s9
  $region1: #{tpu_custom_call.1} parent=0
    #allocation2 [shape = 'u8[16384]{0}', space=vmem, size = 0x4000, scoped, tag = 'input window, operand 1']
    #allocation3 [shape = 's32[2]{0}', space=sflag, size = 0x8, scoped, tag = 'scoped memory for tpu_custom_call.1']
    #allocation4 [shape = 's32[2]{0}', space=sflag, size = 0x8, scoped, tag = 'scoped memory for tpu_custom_call.1']
    #allocation5 [shape = 'u8[16384]{0}', space=vmem, size = 0x4000, scoped, tag = 'input window, operand 2']
    #allocation6 [shape = 's32[2]{0}', space=sflag, size = 0x8, scoped, tag = 'scoped memory for tpu_custom_call.1']
    #allocation7 [shape = 'u8[16384]{0}', space=vmem, size = 0x4000, scoped, tag = 'input window, operand 3']
    #allocation8 [shape = 'u8[4096]{0}', space=vmem, size = 0x1000, scoped, tag = 'output window, operand 0']
    #allocation9 [shape = 'u8[4096]{0}', space=vmem, size = 0x1000, scoped, tag = 'output window, operand 1']
    #allocation10 [shape = 's32[2]{0}', space=sflag, size = 0x8, scoped, tag = 'scoped memory for tpu_custom_call.1']
    #allocation11 [shape = 'u8[4096]{0}', space=vmem, size = 0x1000, scoped, tag = 'output window, operand 2']
    %13 = vsyncpa [#allocation3], 0
    %s14 = scalar_lea.sflag [#allocation3], 1
    %15 = vsyncpa %s14, 0
    %16 = vsyncpa [#allocation6], 0
    %s17 = scalar_lea.sflag [#allocation6], 1
    %18 = vsyncpa %s17, 0
    %19 = vsyncpa [#allocation4], 0
    %s20 = scalar_lea.sflag [#allocation4], 1
    %21 = vsyncpa %s20, 0
    %22 = vsyncpa [#allocation10], 0
    %s23 = scalar_lea.sflag [#allocation10], 1
    %24 = vsyncpa %s23, 0
    loop: start=0, step=1, limit=10
    $region2: #{tpu_custom_call.1} parent=1 // loop_pre_header
      _
    $region3: #{tpu_custom_call.1} parent=1 // loop_header
      %s26 = sphi 0, %s30
      %p27 = scmp.ge.s32.totalorder %s26, 10
      %s33 = sphi 0, %s52
      %s34 = sphi 0, %s48
      %s35 = sphi 0, %s44
      %s36 = sphi 0, %s33
      %s37 = sphi 0, %s34
      %s38 = sphi 0, %s35
      %s39 = sphi 0, %s36
      %s40 = sphi 0, %s37
      %s41 = sphi 0, %s38
      %s57 = sphi 0, %s59
      %s60 = sphi 0, %s57
      %s61 = sphi 0, %s60
      %s77 = sphi 0, %s61
      %s83 = sphi 0, %s85
      %s86 = sphi 0, %s83
      %s87 = sphi 0, %s86
      %s103 = sphi 0, %s87
      %s109 = sphi 0, %s111
      %s112 = sphi 0, %s109
      %s113 = sphi 0, %s112
      %s129 = sphi 0, %s113
      %s135 = sphi 0, %s137
      %s138 = sphi 0, %s135
      %s139 = sphi 0, %s138
      %s155 = sphi 0, %s139
      %s161 = sphi 0, %s163
      %s164 = sphi 0, %s161
      %s165 = sphi 0, %s164
      %s181 = sphi 0, %s165
      %s191 = sphi 0, %s193
      %s194 = sphi 0, %s191
      %s195 = sphi 0, %s194
      %s211 = sphi 0, %s195
      %s221 = sphi 0, %s223
      %s224 = sphi 0, %s221
      %s225 = sphi 0, %s224
      %s241 = sphi 0, %s225
      %s251 = sphi 0, %s253
      %s254 = sphi 0, %s251
      %s255 = sphi 0, %s254
      %s271 = sphi 0, %s255
    $region4: #{tpu_custom_call.1} parent=1 // loop_header_branch
      %29 = sbr.rel (%p27) target = $region8
    $region5: #{tpu_custom_call.1} parent=1 // loop_body
      %s31 = ssub.s32 %s26, 1
      %s32 = ssub.s32 %s26, 2
      %s42 = sadd.s32 1, %s35
      %p43 = scmp.ge.s32.totalorder %s42, 4
      %s44 = scalar_select %p43, 0, %s42
      %s45 = sadd.s32 1, %s34
      %s46 = scalar_select %p43, %s45, %s34
      %p47 = scmp.ge.s32.totalorder %s46, 1
      %s48 = scalar_select %p47, 0, %s46
      %s49 = sadd.s32 1, %s33
      %s50 = scalar_select %p47, %s49, %s33
      %p51 = scmp.ge.s32.totalorder %s50, 2
      %s52 = scalar_select %p51, 0, %s50
      %s53 = ssub.s32 %s33, %s52
      %s54 = ssub.s32 %s34, %s48
      %s55 = sor.u32 %s53, %s54
      %p56 = scmp.eq.s32.totalorder %s55, 0
      %s58 = sadd.s32 %s57, 1
      %s59 = scalar_select %p56, %s57, %s58
      %p62 = pneg %p56
      %p63 = scmp.eq.s32.totalorder %s26, 7
      %p64 = por %p62, %p63
      %p65 = scmp.ne.s32.totalorder %s57, %s60
      %p66 = scmp.eq.s32.totalorder %s26, 0
      %p67 = por %p65, %p66
      %p68 = scmp.ne.s32.totalorder %s57, %s60
      %p69 = scmp.eq.s32.totalorder %s31, 7
      %p70 = por %p68, %p69
      %p71 = scmp.ne.s32.totalorder %s60, %s61
      %p72 = scmp.eq.s32.totalorder %s31, 0
      %p73 = por %p71, %p72
      %p74 = scmp.ne.s32.totalorder %s60, %s61
      %p75 = scmp.eq.s32.totalorder %s32, 7
      %p76 = por %p74, %p75
      %p78 = scmp.ne.s32.totalorder %s61, %s77
      %p79 = scmp.eq.s32.totalorder %s32, 0
      %p80 = por %p78, %p79
      %s81 = ssub.s32 %s35, %s44
      %p82 = scmp.eq.s32.totalorder %s81, 0
      %s84 = sadd.s32 %s83, 1
      %s85 = scalar_select %p82, %s83, %s84
      %p88 = pneg %p82
      %p89 = scmp.eq.s32.totalorder %s26, 7
      %p90 = por %p88, %p89
      %p91 = scmp.ne.s32.totalorder %s83, %s86
      %p92 = scmp.eq.s32.totalorder %s26, 0
      %p93 = por %p91, %p92
      %p94 = scmp.ne.s32.totalorder %s83, %s86
      %p95 = scmp.eq.s32.totalorder %s31, 7
      %p96 = por %p94, %p95
      %p97 = scmp.ne.s32.totalorder %s86, %s87
      %p98 = scmp.eq.s32.totalorder %s31, 0
      %p99 = por %p97, %p98
      %p100 = scmp.ne.s32.totalorder %s86, %s87
      %p101 = scmp.eq.s32.totalorder %s32, 7
      %p102 = por %p100, %p101
      %p104 = scmp.ne.s32.totalorder %s87, %s103
      %p105 = scmp.eq.s32.totalorder %s32, 0
      %p106 = por %p104, %p105
      %s107 = ssub.s32 %s35, %s44
      %p108 = scmp.eq.s32.totalorder %s107, 0
      %s110 = sadd.s32 %s109, 1
      %s111 = scalar_select %p108, %s109, %s110
      %p114 = pneg %p108
      %p115 = scmp.eq.s32.totalorder %s26, 7
      %p116 = por %p114, %p115
      %p117 = scmp.ne.s32.totalorder %s109, %s112
      %p118 = scmp.eq.s32.totalorder %s26, 0
      %p119 = por %p117, %p118
      %p120 = scmp.ne.s32.totalorder %s109, %s112
      %p121 = scmp.eq.s32.totalorder %s31, 7
      %p122 = por %p120, %p121
      %p123 = scmp.ne.s32.totalorder %s112, %s113
      %p124 = scmp.eq.s32.totalorder %s31, 0
      %p125 = por %p123, %p124
      %p126 = scmp.ne.s32.totalorder %s112, %s113
      %p127 = scmp.eq.s32.totalorder %s32, 7
      %p128 = por %p126, %p127
      %p130 = scmp.ne.s32.totalorder %s113, %s129
      %p131 = scmp.eq.s32.totalorder %s32, 0
      %p132 = por %p130, %p131
      %s133 = ssub.s32 %s35, %s44
      %p134 = scmp.eq.s32.totalorder %s133, 0
      %s136 = sadd.s32 %s135, 1
      %s137 = scalar_select %p134, %s135, %s136
      %p140 = pneg %p134
      %p141 = scmp.eq.s32.totalorder %s26, 7
      %p142 = por %p140, %p141
      %p143 = scmp.ne.s32.totalorder %s135, %s138
      %p144 = scmp.eq.s32.totalorder %s26, 0
      %p145 = por %p143, %p144
      %p146 = scmp.ne.s32.totalorder %s135, %s138
      %p147 = scmp.eq.s32.totalorder %s31, 7
      %p148 = por %p146, %p147
      %p149 = scmp.ne.s32.totalorder %s138, %s139
      %p150 = scmp.eq.s32.totalorder %s31, 0
      %p151 = por %p149, %p150
      %p152 = scmp.ne.s32.totalorder %s138, %s139
      %p153 = scmp.eq.s32.totalorder %s32, 7
      %p154 = por %p152, %p153
      %p156 = scmp.ne.s32.totalorder %s139, %s155
      %p157 = scmp.eq.s32.totalorder %s32, 0
      %p158 = por %p156, %p157
      %s159 = ssub.s32 %s35, %s44
      %p160 = scmp.eq.s32.totalorder %s159, 0
      %s162 = sadd.s32 %s161, 1
      %s163 = scalar_select %p160, %s161, %s162
      %p166 = pneg %p160
      %p167 = scmp.eq.s32.totalorder %s26, 7
      %p168 = por %p166, %p167
      %p169 = scmp.ne.s32.totalorder %s161, %s164
      %p170 = scmp.eq.s32.totalorder %s26, 0
      %p171 = por %p169, %p170
      %p172 = scmp.ne.s32.totalorder %s161, %s164
      %p173 = scmp.eq.s32.totalorder %s31, 7
      %p174 = por %p172, %p173
      %p175 = scmp.ne.s32.totalorder %s164, %s165
      %p176 = scmp.eq.s32.totalorder %s31, 0
      %p177 = por %p175, %p176
      %p178 = scmp.ne.s32.totalorder %s164, %s165
      %p179 = scmp.eq.s32.totalorder %s32, 7
      %p180 = por %p178, %p179
      %p182 = scmp.ne.s32.totalorder %s165, %s181
      %p183 = scmp.eq.s32.totalorder %s32, 0
      %p184 = por %p182, %p183
      %s185 = ssub.s32 %s33, %s52
      %s186 = ssub.s32 %s35, %s44
      %s187 = sor.u32 %s185, %s186
      %s188 = ssub.s32 %s34, %s48
      %s189 = sor.u32 %s187, %s188
      %p190 = scmp.eq.s32.totalorder %s189, 0
      %s192 = sadd.s32 %s191, 1
      %s193 = scalar_select %p190, %s191, %s192
      %p196 = pneg %p190
      %p197 = scmp.eq.s32.totalorder %s26, 7
      %p198 = por %p196, %p197
      %p199 = scmp.ne.s32.totalorder %s191, %s194
      %p200 = scmp.eq.s32.totalorder %s26, 0
      %p201 = por %p199, %p200
      %p202 = scmp.ne.s32.totalorder %s191, %s194
      %p203 = scmp.eq.s32.totalorder %s31, 7
      %p204 = por %p202, %p203
      %p205 = scmp.ne.s32.totalorder %s194, %s195
      %p206 = scmp.eq.s32.totalorder %s31, 0
      %p207 = por %p205, %p206
      %p208 = scmp.ne.s32.totalorder %s194, %s195
      %p209 = scmp.eq.s32.totalorder %s32, 7
      %p210 = por %p208, %p209
      %p212 = scmp.ne.s32.totalorder %s195, %s211
      %p213 = scmp.eq.s32.totalorder %s32, 0
      %p214 = por %p212, %p213
      %s215 = ssub.s32 %s33, %s52
      %s216 = ssub.s32 %s35, %s44
      %s217 = sor.u32 %s215, %s216
      %s218 = ssub.s32 %s34, %s48
      %s219 = sor.u32 %s217, %s218
      %p220 = scmp.eq.s32.totalorder %s219, 0
      %s222 = sadd.s32 %s221, 1
      %s223 = scalar_select %p220, %s221, %s222
      %p226 = pneg %p220
      %p227 = scmp.eq.s32.totalorder %s26, 7
      %p228 = por %p226, %p227
      %p229 = scmp.ne.s32.totalorder %s221, %s224
      %p230 = scmp.eq.s32.totalorder %s26, 0
      %p231 = por %p229, %p230
      %p232 = scmp.ne.s32.totalorder %s221, %s224
      %p233 = scmp.eq.s32.totalorder %s31, 7
      %p234 = por %p232, %p233
      %p235 = scmp.ne.s32.totalorder %s224, %s225
      %p236 = scmp.eq.s32.totalorder %s31, 0
      %p237 = por %p235, %p236
      %p238 = scmp.ne.s32.totalorder %s224, %s225
      %p239 = scmp.eq.s32.totalorder %s32, 7
      %p240 = por %p238, %p239
      %p242 = scmp.ne.s32.totalorder %s225, %s241
      %p243 = scmp.eq.s32.totalorder %s32, 0
      %p244 = por %p242, %p243
      %s245 = ssub.s32 %s33, %s52
      %s246 = ssub.s32 %s35, %s44
      %s247 = sor.u32 %s245, %s246
      %s248 = ssub.s32 %s34, %s48
      %s249 = sor.u32 %s247, %s248
      %p250 = scmp.eq.s32.totalorder %s249, 0
      %s252 = sadd.s32 %s251, 1
      %s253 = scalar_select %p250, %s251, %s252
      %p256 = pneg %p250
      %p257 = scmp.eq.s32.totalorder %s26, 7
      %p258 = por %p256, %p257
      %p259 = scmp.ne.s32.totalorder %s251, %s254
      %p260 = scmp.eq.s32.totalorder %s26, 0
      %p261 = por %p259, %p260
      %p262 = scmp.ne.s32.totalorder %s251, %s254
      %p263 = scmp.eq.s32.totalorder %s31, 7
      %p264 = por %p262, %p263
      %p265 = scmp.ne.s32.totalorder %s254, %s255
      %p266 = scmp.eq.s32.totalorder %s31, 0
      %p267 = por %p265, %p266
      %p268 = scmp.ne.s32.totalorder %s254, %s255
      %p269 = scmp.eq.s32.totalorder %s32, 7
      %p270 = por %p268, %p269
      %p272 = scmp.ne.s32.totalorder %s255, %s271
      %p273 = scmp.eq.s32.totalorder %s32, 0
      %p274 = por %p272, %p273
      %p275 = scmp.le.s32.totalorder 1, %s26
      %p276 = scmp.lt.s32.totalorder %s26, 9
      %p277 = pnand %p275, %p276
      %p278 = pneg %p277
      // Predicated region
      $region9: #{tpu_custom_call.1} parent=5 // pred_check
        _
      $region10: #{tpu_custom_call.1} parent=5 // pred_check_branch
        %280 = sbr.rel (%p277) target = $region12
      $region11: #{tpu_custom_call.1} parent=5 // pred_region
        %s281 = ssub.s32 %s26, 1
      $region12: #{tpu_custom_call.1} parent=5 // pred_fallthru
        _
      %p282 = scmp.lt.s32.totalorder %s26, 8
      // Predicated region
      $region13: #{tpu_custom_call.1} parent=5 // pred_check
        %p283 = pneg %p282
      $region14: #{tpu_custom_call.1} parent=5 // pred_check_branch
        %285 = sbr.rel (%p283) target = $region16
      $region15: #{tpu_custom_call.1} parent=5 // pred_region
        // Predicated region
        $region17: #{tpu_custom_call.1} parent=15 // pred_check
          %p286 = pneg %p67
        $region18: #{tpu_custom_call.1} parent=15 // pred_check_branch
          %288 = sbr.rel (%p286) target = $region20
        $region19: #{tpu_custom_call.1} parent=15 // pred_region
          %p289 = scmp.lt.s32.totalorder %s33, 1
          %s290 = scalar_select %p289, %s33, 1
          %p291 = scmp.lt.s32.totalorder %s34, 0
          %s292 = scalar_select %p291, %s34, 0
          %s293 = sadd.s32 %s292, %s290
          %s294 = smul.addr %s293, 4
          %s295 = scalar_lea.vmem %s0, %s294
        $region20: #{tpu_custom_call.1} parent=15 // pred_fallthru
          _
        // Predicated region
        $region21: #{tpu_custom_call.1} parent=15 // pred_check
          %p296 = pneg %p93
        $region22: #{tpu_custom_call.1} parent=15 // pred_check_branch
          %298 = sbr.rel (%p296) target = $region24
        $region23: #{tpu_custom_call.1} parent=15 // pred_region
          %s299 = sand.u32 %s83, 1
          %s300 = scalar_lea.sflag [#allocation3], %s299
          %s301 = sand.u32 %s83, 1
          %s302 = smul.addr %s301, 16
          %s303 = scalar_lea.vmem [#allocation2], %s302
          %305 = vsyncadd %s300, 0
          %s306 = smul.addr %s35, 4
          %s307 = smul.addr %s306, 4
          %s308 = scalar_lea.hbm %s1, %s307
          %s309 = sshll.u32 %s308, 4
          %s310 = int_to_ptr.hbm [resolvable:$true] %s309
          %s311 = sshll.u32 %s303, 4
          %s312 = int_to_ptr.vmem [resolvable:$true] %s311
          %317 = dma.hbm_to_vmem [thread:$0]  %s310, 256, %s312, %s300, 64, 64, 4
        $region24: #{tpu_custom_call.1} parent=15 // pred_fallthru
          _
        // Predicated region
        $region25: #{tpu_custom_call.1} parent=15 // pred_check
          %p318 = pneg %p119
        $region26: #{tpu_custom_call.1} parent=15 // pred_check_branch
          %320 = sbr.rel (%p318) target = $region28
        $region27: #{tpu_custom_call.1} parent=15 // pred_region
          %s321 = sand.u32 %s26, 1
          %s322 = scalar_lea.sflag [#allocation6], %s321
          %s323 = sand.u32 %s109, 1
          %s324 = smul.addr %s323, 16
          %s325 = scalar_lea.vmem [#allocation5], %s324
          %327 = vsyncadd %s322, 0
          %s328 = smul.addr %s35, 4
          %s329 = smul.addr %s328, 4
          %s330 = scalar_lea.hbm %s2, %s329
          %s331 = sshll.u32 %s330, 4
          %s332 = int_to_ptr.hbm [resolvable:$true] %s331
          %s333 = sshll.u32 %s325, 4
          %s334 = int_to_ptr.vmem [resolvable:$true] %s333
          %339 = dma.hbm_to_vmem [thread:$0]  %s332, 256, %s334, %s322, 64, 64, 4
        $region28: #{tpu_custom_call.1} parent=15 // pred_fallthru
          _
        // Predicated region
        $region29: #{tpu_custom_call.1} parent=15 // pred_check
          %p340 = pneg %p145
        $region30: #{tpu_custom_call.1} parent=15 // pred_check_branch
          %342 = sbr.rel (%p340) target = $region32
        $region31: #{tpu_custom_call.1} parent=15 // pred_region
          %s343 = sand.u32 %s26, 1
          %s344 = scalar_lea.sflag [#allocation6], %s343
          %s345 = sand.u32 %s135, 1
          %s346 = smul.addr %s345, 16
          %s347 = scalar_lea.vmem [#allocation7], %s346
          %349 = vsyncadd %s344, 0
          %s350 = smul.addr %s35, 4
          %s351 = smul.addr %s350, 4
          %s352 = scalar_lea.hbm %s3, %s351
          %s353 = sshll.u32 %s352, 4
          %s354 = int_to_ptr.hbm [resolvable:$true] %s353
          %s355 = sshll.u32 %s347, 4
          %s356 = int_to_ptr.vmem [resolvable:$true] %s355
          %361 = dma.hbm_to_vmem [thread:$0]  %s354, 256, %s356, %s344, 64, 64, 4
        $region32: #{tpu_custom_call.1} parent=15 // pred_fallthru
          _
        // Predicated region
        $region33: #{tpu_custom_call.1} parent=15 // pred_check
          %p362 = pneg %p171
        $region34: #{tpu_custom_call.1} parent=15 // pred_check_branch
          %364 = sbr.rel (%p362) target = $region36
        $region35: #{tpu_custom_call.1} parent=15 // pred_region
          %p365 = scmp.lt.s32.totalorder %s35, 3
          %s366 = scalar_select %p365, %s35, 3
          %s367 = smul.addr %s366, 4
          %s368 = scalar_lea.vmem %s4, %s367
        $region36: #{tpu_custom_call.1} parent=15 // pred_fallthru
          _
      $region16: #{tpu_custom_call.1} parent=5 // pred_fallthru
        _
      %p369 = scmp.le.s32.totalorder 1, %s26
      %p370 = scmp.lt.s32.totalorder %s26, 9
      %p371 = pnand %p369, %p370
      %p372 = pneg %p371
      // Predicated region
      $region37: #{tpu_custom_call.1} parent=5 // pred_check
        _
      $region38: #{tpu_custom_call.1} parent=5 // pred_check_branch
        %374 = sbr.rel (%p371) target = $region40
      $region39: #{tpu_custom_call.1} parent=5 // pred_region
        %s375 = ssub.s32 %s26, 1
        %s376 = sand.u32 %s86, 1
        %s377 = scalar_lea.sflag [#allocation3], %s376
        %s378 = sand.u32 %s86, 1
        %s379 = smul.addr %s378, 16
        %s380 = scalar_lea.vmem [#allocation2], %s379
        // Predicated region
        $region41: #{tpu_custom_call.1} parent=39 // pred_check
          %p381 = pneg %p99
        $region42: #{tpu_custom_call.1} parent=39 // pred_check_branch
          %383 = sbr.rel (%p381) target = $region44
        $region43: #{tpu_custom_call.1} parent=39 // pred_region
          %385 = dma.done %s377, 256
        $region44: #{tpu_custom_call.1} parent=39 // pred_fallthru
          _
        %s386 = sand.u32 %s31, 1
        %s387 = scalar_lea.sflag [#allocation6], %s386
        %s388 = sand.u32 %s112, 1
        %s389 = smul.addr %s388, 16
        %s390 = scalar_lea.vmem [#allocation5], %s389
        // Predicated region
        $region45: #{tpu_custom_call.1} parent=39 // pred_check
          %p391 = pneg %p125
        $region46: #{tpu_custom_call.1} parent=39 // pred_check_branch
          %393 = sbr.rel (%p391) target = $region48
        $region47: #{tpu_custom_call.1} parent=39 // pred_region
          %395 = dma.done %s387, 256
        $region48: #{tpu_custom_call.1} parent=39 // pred_fallthru
          _
        %s396 = sand.u32 %s31, 1
        %s397 = scalar_lea.sflag [#allocation6], %s396
        %s398 = sand.u32 %s138, 1
        %s399 = smul.addr %s398, 16
        %s400 = scalar_lea.vmem [#allocation7], %s399
        // Predicated region
        $region49: #{tpu_custom_call.1} parent=39 // pred_check
          %p401 = pneg %p151
        $region50: #{tpu_custom_call.1} parent=39 // pred_check_branch
          %403 = sbr.rel (%p401) target = $region52
        $region51: #{tpu_custom_call.1} parent=39 // pred_region
          %405 = dma.done %s397, 256
        $region52: #{tpu_custom_call.1} parent=39 // pred_fallthru
          _
        %p406 = scmp.lt.s32.totalorder %s36, 1
        %s407 = scalar_select %p406, %s36, 1
        %p408 = scmp.lt.s32.totalorder %s37, 0
        %s409 = scalar_select %p408, %s37, 0
        %s410 = sadd.s32 %s409, %s407
        %s411 = smul.addr %s410, 4
        %s412 = scalar_lea.vmem %s0, %s411
        %p413 = pneg %p73
        %p414 = pneg %p70
        %s415 = sand.u32 %s86, 1
        %s416 = scalar_lea.sflag [#allocation3], %s415
        %s417 = sand.u32 %s86, 1
        %s418 = smul.addr %s417, 16
        %s419 = scalar_lea.vmem [#allocation2], %s418
        %p420 = pneg %p99
        %p421 = pneg %p96
        %s422 = sand.u32 %s31, 1
        %s423 = scalar_lea.sflag [#allocation6], %s422
        %s424 = sand.u32 %s112, 1
        %s425 = smul.addr %s424, 16
        %s426 = scalar_lea.vmem [#allocation5], %s425
        %p427 = pneg %p125
        %p428 = pneg %p122
        %s429 = sand.u32 %s31, 1
        %s430 = scalar_lea.sflag [#allocation6], %s429
        %s431 = sand.u32 %s138, 1
        %s432 = smul.addr %s431, 16
        %s433 = scalar_lea.vmem [#allocation7], %s432
        %p434 = pneg %p151
        %p435 = pneg %p148
        %p436 = scmp.lt.s32.totalorder %s38, 3
        %s437 = scalar_select %p436, %s38, 3
        %s438 = smul.addr %s437, 4
        %s439 = scalar_lea.vmem %s4, %s438
        %p440 = pneg %p177
        %p441 = pneg %p174
        %p442 = pneg %p207
        %p443 = pneg %p204
        %s444 = sand.u32 %s194, 1
        %s445 = scalar_lea.sflag [#allocation4], %s444
        %s446 = sand.u32 %s194, 1
        %s447 = smul.addr %s446, 4
        %s448 = scalar_lea.vmem [#allocation8], %s447
        %p449 = pneg %p237
        %p450 = pneg %p234
        %s451 = sand.u32 %s31, 1
        %s452 = scalar_lea.sflag [#allocation10], %s451
        %s453 = sand.u32 %s224, 1
        %s454 = smul.addr %s453, 4
        %s455 = scalar_lea.vmem [#allocation9], %s454
        %p456 = pneg %p267
        %p457 = pneg %p264
        %s458 = sand.u32 %s31, 1
        %s459 = scalar_lea.sflag [#allocation10], %s458
        %s460 = sand.u32 %s254, 1
        %s461 = smul.addr %s460, 4
        %s462 = scalar_lea.vmem [#allocation11], %s461
        %p463 = scmp.lt.s32.totalorder %s36, 1
        %s464 = scalar_select %p463, %s36, 1
        %p465 = scmp.lt.s32.totalorder %s37, 0
        %s466 = scalar_select %p465, %s37, 0
        %s467 = sadd.s32 %s466, %s464
        %s468 = smul.addr %s467, 4
        %s469 = scalar_lea.vmem %s0, %s468
        %p470 = scmp.lt.s32.totalorder %s38, 3
        %s471 = scalar_select %p470, %s38, 3
        %s472 = smul.addr %s471, 4
        %s473 = scalar_lea.vmem %s4, %s472
        %v475 = vld [vmem:[%s469] sm:$0xf]
        %v476 = vld [vmem:[%s473] sm:$0x7]
        %v477 = vld [vmem:[%s380] sm:$0xf]
        %v478 = vld [vmem:[%s380 + $0x4] sm:$0xf]
        %v479 = vld [vmem:[%s380 + $0x8] sm:$0xf]
        %v480 = vld [vmem:[%s380 + $0xc] sm:$0xf]
        %v481 = vperm.slane %v476, 0
        %v486 = vunpack.c.l.b16 %v477
        %v487 = vunpack.c.l.b16 %v478
        %v488 = vunpack.c.l.b16 %v479
        %v489 = vunpack.c.l.b16 %v480
        %v490 = vpack.c.b16 %v487, %v486
        %v491 = vpack.c.b16 %v489, %v488
        %vm494 = vcmask 261120
        %v496 = vsel %vm494, %v475, 0
        %498 = vmatpush.bf16.msra.mxu0 0
        %499 = vmatpush.bf16.msra.mxu0 0
        %500 = vmatpush.bf16.msra.mxu0 0
        %501 = vmatpush.bf16.msra.mxu0 0
        %502 = vmatpush.bf16.msra.mxu0 0
        %503 = vmatpush.bf16.msra.mxu0 0
        %504 = vmatpush.bf16.msra.mxu0 %v491
        %505 = vmatpush.bf16.msra.mxu0 %v490
        %506 = vmatmul.bf16.gmra.mxu0 %v496
        %v507 = vpop.f32.mrf.mxu0
        %v508 = vadd.f32 %v481, %v507
        %v509 = vpop.f32.mrf.mxu0
        %510 = vdwg.mxu0
        %v511 = vld [vmem:[%s390] sm:$0xf]
        %v512 = vld [vmem:[%s390 + $0x4] sm:$0xf]
        %v513 = vld [vmem:[%s390 + $0x8] sm:$0xf]
        %v514 = vld [vmem:[%s390 + $0xc] sm:$0xf]
        %v515 = vperm.slane %v476, 1
        %v520 = vunpack.c.l.b16 %v511
        %v521 = vunpack.c.l.b16 %v512
        %v522 = vunpack.c.l.b16 %v513
        %v523 = vunpack.c.l.b16 %v514
        %v524 = vpack.c.b16 %v521, %v520
        %v525 = vpack.c.b16 %v523, %v522
        %528 = vmatpush.bf16.msra.mxu0 0
        %529 = vmatpush.bf16.msra.mxu0 0
        %530 = vmatpush.bf16.msra.mxu0 0
        %531 = vmatpush.bf16.msra.mxu0 0
        %532 = vmatpush.bf16.msra.mxu0 0
        %533 = vmatpush.bf16.msra.mxu0 0
        %534 = vmatpush.bf16.msra.mxu0 %v525
        %535 = vmatpush.bf16.msra.mxu0 %v524
        %536 = vmatmul.bf16.gmra.mxu0 %v496
        %v537 = vpop.f32.mrf.mxu0
        %v538 = vadd.f32 %v515, %v537
        %v539 = vpop.f32.mrf.mxu0
        %540 = vdwg.mxu0
        %v541 = vld [vmem:[%s400] sm:$0xf]
        %v542 = vld [vmem:[%s400 + $0x4] sm:$0xf]
        %v543 = vld [vmem:[%s400 + $0x8] sm:$0xf]
        %v544 = vld [vmem:[%s400 + $0xc] sm:$0xf]
        %v545 = vperm.slane %v476, 2
        %v550 = vunpack.c.l.b16 %v541
        %v551 = vunpack.c.l.b16 %v542
        %v552 = vunpack.c.l.b16 %v543
        %v553 = vunpack.c.l.b16 %v544
        %v554 = vpack.c.b16 %v551, %v550
        %v555 = vpack.c.b16 %v553, %v552
        %558 = vmatpush.bf16.msra.mxu0 0
        %559 = vmatpush.bf16.msra.mxu0 0
        %560 = vmatpush.bf16.msra.mxu0 0
        %561 = vmatpush.bf16.msra.mxu0 0
        %562 = vmatpush.bf16.msra.mxu0 0
        %563 = vmatpush.bf16.msra.mxu0 0
        %564 = vmatpush.bf16.msra.mxu0 %v555
        %565 = vmatpush.bf16.msra.mxu0 %v554
        %566 = vmatmul.bf16.gmra.mxu0 %v496
        %v567 = vpop.f32.mrf.mxu0
        %v568 = vadd.f32 %v545, %v567
        %v569 = vpop.f32.mrf.mxu0
        %570 = vdwg.mxu0
        %v571 = vpack.c.bf16 %v508, %v508
        %572 = vst [vmem:[%s448] sm:$0xf] %v571
        %v573 = vpack.c.bf16 %v538, %v538
        %574 = vst [vmem:[%s455] sm:$0xf] %v573
        %v575 = vpack.c.bf16 %v568, %v568
        %576 = vst [vmem:[%s462] sm:$0xf] %v575
        %s577 = sand.u32 %s194, 1
        %s578 = scalar_lea.sflag [#allocation4], %s577
        %s579 = sand.u32 %s194, 1
        %s580 = smul.addr %s579, 4
        %s581 = scalar_lea.vmem [#allocation8], %s580
        %s582 = sand.u32 %s31, 1
        %s583 = scalar_lea.sflag [#allocation10], %s582
        %s584 = sand.u32 %s224, 1
        %s585 = smul.addr %s584, 4
        %s586 = scalar_lea.vmem [#allocation9], %s585
        %s587 = sand.u32 %s31, 1
        %s588 = scalar_lea.sflag [#allocation10], %s587
        %s589 = sand.u32 %s254, 1
        %s590 = smul.addr %s589, 4
        %s591 = scalar_lea.vmem [#allocation11], %s590
        // Predicated region
        $region53: #{tpu_custom_call.1} parent=39 // pred_check
          %p592 = pneg %p204
        $region54: #{tpu_custom_call.1} parent=39 // pred_check_branch
          %594 = sbr.rel (%p592) target = $region56
        $region55: #{tpu_custom_call.1} parent=39 // pred_region
          %596 = vsyncadd %s578, 0
          %s597 = sadd.s32 %s37, %s38
          %s598 = smul.addr %s36, 4
          %s599 = sadd.s32 %s597, %s598
          %s600 = smul.addr %s599, 4
          %s601 = scalar_lea.hbm %s5, %s600
          %s603 = sshll.u32 %s581, 4
          %s604 = int_to_ptr.vmem [resolvable:$true] %s603
          %s605 = sshll.u32 %s601, 4
          %s606 = int_to_ptr.hbm [resolvable:$true] %s605
          %608 = dma.vmem_to_hbm [thread:$0]  %s604, 64, %s606, %s578
        $region56: #{tpu_custom_call.1} parent=39 // pred_fallthru
          _
        // Predicated region
        $region57: #{tpu_custom_call.1} parent=39 // pred_check
          %p609 = pneg %p234
        $region58: #{tpu_custom_call.1} parent=39 // pred_check_branch
          %611 = sbr.rel (%p609) target = $region60
        $region59: #{tpu_custom_call.1} parent=39 // pred_region
          %613 = vsyncadd %s583, 0
          %s614 = sadd.s32 %s37, %s38
          %s615 = smul.addr %s36, 4
          %s616 = sadd.s32 %s614, %s615
          %s617 = smul.addr %s616, 4
          %s618 = scalar_lea.hbm %s6, %s617
          %s620 = sshll.u32 %s586, 4
          %s621 = int_to_ptr.vmem [resolvable:$true] %s620
          %s622 = sshll.u32 %s618, 4
          %s623 = int_to_ptr.hbm [resolvable:$true] %s622
          %625 = dma.vmem_to_hbm [thread:$0]  %s621, 64, %s623, %s583
        $region60: #{tpu_custom_call.1} parent=39 // pred_fallthru
          _
        // Predicated region
        $region61: #{tpu_custom_call.1} parent=39 // pred_check
          %p626 = pneg %p264
        $region62: #{tpu_custom_call.1} parent=39 // pred_check_branch
          %628 = sbr.rel (%p626) target = $region64
        $region63: #{tpu_custom_call.1} parent=39 // pred_region
          %630 = vsyncadd %s588, 0
          %s631 = sadd.s32 %s37, %s38
          %s632 = smul.addr %s36, 4
          %s633 = sadd.s32 %s631, %s632
          %s634 = smul.addr %s633, 4
          %s635 = scalar_lea.hbm %s7, %s634
          %s637 = sshll.u32 %s591, 4
          %s638 = int_to_ptr.vmem [resolvable:$true] %s637
          %s639 = sshll.u32 %s635, 4
          %s640 = int_to_ptr.hbm [resolvable:$true] %s639
          %642 = dma.vmem_to_hbm [thread:$0]  %s638, 64, %s640, %s588
        $region64: #{tpu_custom_call.1} parent=39 // pred_fallthru
          _
      $region40: #{tpu_custom_call.1} parent=5 // pred_fallthru
        _
      %p643 = scmp.le.s32.totalorder 2, %s26
      // Predicated region
      $region65: #{tpu_custom_call.1} parent=5 // pred_check
        %p644 = pneg %p643
      $region66: #{tpu_custom_call.1} parent=5 // pred_check_branch
        %646 = sbr.rel (%p644) target = $region68
      $region67: #{tpu_custom_call.1} parent=5 // pred_region
        %s647 = ssub.s32 %s26, 2
        // Predicated region
        $region69: #{tpu_custom_call.1} parent=67 // pred_check
          %p648 = pneg %p210
        $region70: #{tpu_custom_call.1} parent=67 // pred_check_branch
          %650 = sbr.rel (%p648) target = $region72
        $region71: #{tpu_custom_call.1} parent=67 // pred_region
          %s651 = sand.u32 %s195, 1
          %s652 = scalar_lea.sflag [#allocation4], %s651
          %s653 = sand.u32 %s195, 1
          %s654 = smul.addr %s653, 4
          %s655 = scalar_lea.vmem [#allocation8], %s654
          %657 = dma.done %s652, 64
        $region72: #{tpu_custom_call.1} parent=67 // pred_fallthru
          _
        // Predicated region
        $region73: #{tpu_custom_call.1} parent=67 // pred_check
          %p658 = pneg %p240
        $region74: #{tpu_custom_call.1} parent=67 // pred_check_branch
          %660 = sbr.rel (%p658) target = $region76
        $region75: #{tpu_custom_call.1} parent=67 // pred_region
          %s661 = sand.u32 %s32, 1
          %s662 = scalar_lea.sflag [#allocation10], %s661
          %s663 = sand.u32 %s225, 1
          %s664 = smul.addr %s663, 4
          %s665 = scalar_lea.vmem [#allocation9], %s664
          %667 = dma.done %s662, 64
        $region76: #{tpu_custom_call.1} parent=67 // pred_fallthru
          _
        // Predicated region
        $region77: #{tpu_custom_call.1} parent=67 // pred_check
          %p668 = pneg %p270
        $region78: #{tpu_custom_call.1} parent=67 // pred_check_branch
          %670 = sbr.rel (%p668) target = $region80
        $region79: #{tpu_custom_call.1} parent=67 // pred_region
          %s671 = sand.u32 %s32, 1
          %s672 = scalar_lea.sflag [#allocation10], %s671
          %s673 = sand.u32 %s255, 1
          %s674 = smul.addr %s673, 4
          %s675 = scalar_lea.vmem [#allocation11], %s674
          %677 = dma.done %s672, 64
        $region80: #{tpu_custom_call.1} parent=67 // pred_fallthru
          _
      $region68: #{tpu_custom_call.1} parent=5 // pred_fallthru
        _
    $region6: #{tpu_custom_call.1} parent=1 // loop_footer
      %s30 = sadd.s32 1, %s26
    $region7: #{tpu_custom_call.1} parent=1 // loop_footer_branch
      %25 = sbr.rel target = $region3
    $region8: #{tpu_custom_call.1} parent=1 // loop_exit
      _
    %678 = vsyncpa [#allocation3], 1
    %s679 = scalar_lea.sflag [#allocation3], 1
    %680 = vsyncpa %s679, 1
    %681 = vsyncpa [#allocation6], 1
    %s682 = scalar_lea.sflag [#allocation6], 1
    %683 = vsyncpa %s682, 1
    %684 = vsyncpa [#allocation4], 1
    %s685 = scalar_lea.sflag [#allocation4], 1
    %686 = vsyncpa %s685, 1
    %687 = vsyncpa [#allocation10], 1
    %s688 = scalar_lea.sflag [#allocation10], 1
    %689 = vsyncpa %s688, 1

</llo_original>
